<compile_context>
chip_gen: v5e
topology: v5e:2x2
jax: 0.10.0
libtpu: 0.0.40
codegen_flags: <defaults>
</compile_context>

<pallas_src>
import math
import functools

import jax
import jax.numpy as jnp
from jax.experimental import pallas as pl
from jax.experimental.pallas import tpu as pltpu

LN_EPS = 1e-6  # nn.LayerNorm(dim, eps=1e-6) in the reference model


def _round_up(x, m):
    return (x + m - 1) // m * m


# ----------------------------- in-kernel helpers -----------------------------

def _layernorm(x, g, b, eps=LN_EPS):
    mu = jnp.mean(x, axis=-1, keepdims=True)
    var = jnp.mean(jnp.square(x - mu), axis=-1, keepdims=True)
    return (x - mu) * jax.lax.rsqrt(var + eps) * g + b


def _gelu(x):
    # TODO(synk): reference nn.GELU is exact erf-based; tanh approximation used
    # here (Mosaic-safe transcendentals), numerical deviation ~1e-3.
    c = math.sqrt(2.0 / math.pi)
    return 0.5 * x * (1.0 + jnp.tanh(c * (x + 0.044715 * x * x * x)))


# ---------------------------- VMEM budget helpers ----------------------------

def _vmem_cap_bytes():
    """Scoped-VMEM ceiling: ~75% of physical VMEM, never above 64 MiB.

    v5e/v6e (128 MiB physical) -> 64 MiB; v7x (64 MiB physical) -> 48 MiB,
    leaving headroom for Mosaic internal scratch / pipeline buffers.
    """
    try:
        phys = int(pltpu.get_tpu_info().vmem_capacity_bytes)
    except Exception:  # conservative (v7x-sized) fallback
        phys = 64 << 20
    return min((phys * 3) // 4, 64 << 20)


def _vmem_estimate_bytes(Bb, S, D, F, H):
    """Rough per-step VMEM footprint for the fused transformer kernel."""
    w_layer = 2 * (4 * D * D + 2 * D * F)            # bf16 matmul weights / layer
    small = 4 * (10 * D + 2 * F)                     # f32 biases + LN params
    weights = 2 * (w_layer + small)                  # double-buffered along L
    act_blocks = 5 * 4 * Bb * S * D                  # x in (x2) + out (x2) + residual
    temps = 4 * (Bb * S * (10 * D + 3 * F)           # q/k/v/ctx/mlp temporaries
                 + 2 * Bb * H * S * S)               # (Bb*H, S, S) scores + probs
    return weights + act_blocks + temps + (8 << 20)


def _choose_row_batch(B, S, D, F, H, cap):
    """Largest row-batch Bb (dividing B) whose temporaries fit the VMEM budget.

    The f32 score tensor scales as Bb*H*S^2, which is what limits Bb for real
    ViT configs (especially on v7x's 64 MiB VMEM).  Bb must also give an
    (8,128)-legal block: Bb*S % 8 == 0, or Bb == B (block == full array).
    """
    legal = [bb for bb in range(1, B + 1)
             if B % bb == 0 and (bb == B or (bb * S) % 8 == 0)]
    fitting = [bb for bb in legal if _vmem_estimate_bytes(bb, S, D, F, H) <= cap]
    if fitting:
        return max(fitting)
    return min(legal, key=lambda bb: _vmem_estimate_bytes(bb, S, D, F, H))


# ------------------------- patch-embedding linear ----------------------------

def linear_kernel(x_ref, w_ref, b_ref, o_ref):
    """o = x @ w + b.  x:(tm,K) bf16, w:(K,N) bf16, b:(1,N) f32 -> o:(tm,N) f32."""
    o_ref[...] = (
        jnp.dot(x_ref[...], w_ref[...], preferred_element_type=jnp.float32)
        + b_ref[...]
    )


def linear_tiled(x2d, w, b, tm=256):
    """Row-tiled dense layer (patch embedding). Pads rows to a tile multiple."""
    M, K = x2d.shape
    N = w.shape[1]
    tm = min(tm, _round_up(M, 8))
    Mp = _round_up(M, tm)
    if Mp != M:
        x2d = jnp.pad(x2d, ((0, Mp - M), (0, 0)))
    out = pl.pallas_call(
        linear_kernel,
        grid=(Mp // tm,),
        in_specs=[pl.BlockSpec((tm, K), lambda i: (i, 0)),
                  pl.BlockSpec((K, N), lambda i: (0, 0)),
                  pl.BlockSpec((1, N), lambda i: (0, 0))],
        out_specs=pl.BlockSpec((tm, N), lambda i: (i, 0)),
        out_shape=jax.ShapeDtypeStruct((Mp, N), jnp.float32),
        compiler_params=pltpu.CompilerParams(dimension_semantics=("parallel",)),
    )(x2d.astype(jnp.bfloat16), w, b)
    return out[:M]


# ---------------------- fused transformer-stack kernel -----------------------

_BLOCK_PARAM_NAMES = ('ln1_g', 'ln1_b', 'wq', 'bq', 'wk', 'bk', 'wv', 'bv',
                      'wo', 'bo', 'ln2_g', 'ln2_b', 'w1', 'b1', 'w2', 'b2')


def stack_kernel(num_heads, row_batch, seq,
                 x_ref,
                 ln1g, ln1b, wq, bq, wk, bk, wv, bv, wo, bo,
                 ln2g, ln2b, w1, b1, w2, b2,
                 o_ref, res_ref):
    """One grid step = one transformer layer applied to a (row_batch*seq, D) slab.

    grid = (row_batches, num_layers).  The residual stream is carried in the
    VMEM scratch `res_ref` across the layer axis; layer l+1's weight blocks are
    prefetched (default double buffering) while layer l computes.
    """
    l = pl.program_id(1)

    @pl.when(l == 0)
    def _():
        res_ref[...] = x_ref[...]

    x = res_ref[...]                           # (R, D) f32 residual stream
    D = x.shape[-1]
    H = num_heads
    hd = D // H
    S = seq

    # ---- multi-head self-attention (pre-norm), bf16 MXU inputs, f32 accum ----
    h = _layernorm(x, ln1g[0], ln1b[0]).astype(jnp.bfloat16)
    # QKV over the whole slab: MXU M-dim = row_batch*seq rows.
    # (attention scale 1/sqrt(hd) is folded into wq/bq at parameter setup)
    q = jnp.dot(h, wq[0], preferred_element_type=jnp.float32) + bq[0]
    k = jnp.dot(h, wk[0], preferred_element_type=jnp.float32) + bk[0]
    v = jnp.dot(h, wv[0], preferred_element_type=jnp.float32) + bv[0]

    # TODO(synk): replace the per-(row,head) slice+stack / concat with a single
    # lane-layout-aware reshape (pltpu.einshape) to cut XLU/vreg traffic; all
    # slice bounds below are static, so Mosaic lowers them to plain copies.
    def split_heads(t):
        return jnp.stack(
            [t[b * S:(b + 1) * S, i * hd:(i + 1) * hd]
             for b in range(row_batch) for i in range(H)]).astype(jnp.bfloat16)

    q3 = split_heads(q)                        # (Bb*H, S, hd)
    k3 = split_heads(k)
    v3 = split_heads(v)

    s = jnp.einsum('hqd,hkd->hqk', q3, k3,
                   preferred_element_type=jnp.float32)             # (Bb*H, S, S)
    s = s - jnp.max(s, axis=-1, keepdims=True)
    p = jnp.exp(s)
    p = p * pl.reciprocal(jnp.sum(p, axis=-1, keepdims=True), approx=True)
    ctx = jnp.einsum('hqk,hkd->hqd', p.astype(jnp.bfloat16), v3,
                     preferred_element_type=jnp.float32)           # (Bb*H, S, hd)

    # merge heads back into a (R, D) slab -> ONE full-width output projection.
    ctx_rows = jnp.concatenate(
        [jnp.concatenate([ctx[b * H + i] for i in range(H)], axis=-1)
         for b in range(row_batch)], axis=0).astype(jnp.bfloat16)
    x = x + jnp.dot(ctx_rows, wo[0], preferred_element_type=jnp.float32) + bo[0]

    # ---- position-wise feed-forward (pre-norm) ----
    h2 = _layernorm(x, ln2g[0], ln2b[0]).astype(jnp.bfloat16)
    f = jnp.dot(h2, w1[0], preferred_element_type=jnp.float32) + b1[0]
    f = _gelu(f).astype(jnp.bfloat16)
    f = jnp.dot(f, w2[0], preferred_element_type=jnp.float32) + b2[0]
    x = x + f

    res_ref[...] = x

    @pl.when(l == pl.num_programs(1) - 1)
    def _():
        o_ref[...] = x


def transformer_stack(z2d, blocks, *, num_heads, batch, seq):
    """Apply all transformer layers to flattened tokens z2d: (batch*seq, D)."""
    R, D = z2d.shape
    F = blocks['w1'].shape[-1]
    L = blocks['wq'].shape[0]

    cap = _vmem_cap_bytes()
    Bb = _choose_row_batch(batch, seq, D, F, num_heads, cap)
    n_row = batch // Bb
    vmem_limit = int(min(cap, max(_vmem_estimate_bytes(Bb, seq, D, F, num_heads),
                                  32 << 20)))

    def wspec(a):
        zeros = (0,) * (a.ndim - 1)
        return pl.BlockSpec((1,) + a.shape[1:], lambda r, l: (l,) + zeros)

    in_specs = [pl.BlockSpec((Bb * seq, D), lambda r, l: (r, 0))]
    args = [z2d]
    for name in _BLOCK_PARAM_NAMES:
        a = blocks[name]
        in_specs.append(wspec(a))
        args.append(a)

    return pl.pallas_call(
        functools.partial(stack_kernel, num_heads, Bb, seq),
        grid=(n_row, L),
        in_specs=in_specs,
        out_specs=pl.BlockSpec((Bb * seq, D), lambda r, l: (r, 0)),
        out_shape=jax.ShapeDtypeStruct((R, D), jnp.float32),
        scratch_shapes=[pltpu.VMEM((Bb * seq, D), jnp.float32)],
        compiler_params=pltpu.CompilerParams(
            dimension_semantics=("parallel", "arbitrary"),
            vmem_limit_bytes=vmem_limit),
    )(*args)


# ------------------------------ classifier head -------------------------------

def head_kernel(cls_ref, g_ref, b_ref, w_ref, fb_ref, o_ref):
    """Final LayerNorm on the class token + classification fc (lane-padded N)."""
    h = _layernorm(cls_ref[...].astype(jnp.float32), g_ref[...], b_ref[...])
    o_ref[...] = (jnp.dot(h.astype(jnp.bfloat16), w_ref[...],
                          preferred_element_type=jnp.float32) + fb_ref[...])


# ------------------------------- model wrapper ---------------------------------

def vit_forward(x, params, return_cls=False):
    """x: (B, C, H, W) float32 (NCHW, like PyTorch). Returns (B, num_classes)."""
    B, C, H, W = x.shape
    fh = fw = params['patch']
    gh, gw = H // fh, W // fw
    D = params['dim']
    S = gh * gw + 1

    # Conv2d(kernel=stride=patch) == patchify + matmul; contraction dim padded
    # to 128 lanes (zero columns / zero weight rows) so the MXU runs full depth.
    p = x.reshape(B, C, gh, fh, gw, fw)
    p = p.transpose(0, 2, 4, 1, 3, 5).reshape(B * gh * gw, C * fh * fw)
    p = jnp.pad(p, ((0, 0), (0, params['patch_in_pad'] - params['patch_in'])))
    z = linear_tiled(p, params['patch_w'], params['patch_b'])      # Pallas matmul
    z = z.reshape(B, gh * gw, D)

    # class token + 1D positional embedding (glue).
    cls = jnp.broadcast_to(params['class_token'], (B, 1, D))
    z = jnp.concatenate([cls, z], axis=1) + params['pos_emb']

    # tokens flattened to (B*S, D): transformer kernel sees lane-dense 2-D slabs.
    z2 = z.reshape(B * S, D)
    z2 = transformer_stack(z2, params['blocks'],
                           num_heads=params['num_heads'], batch=B, seq=S)

    # self.norm(x)[:, 0] followed by fc  ==  LayerNorm(cls token) @ W + b
    cls_tok = z2.reshape(B, S, D)[:, 0, :]
    ncls_pad = params['num_classes_pad']
    logits = pl.pallas_call(
        head_kernel,
        grid=(1,),
        in_specs=[pl.BlockSpec((B, D), lambda i: (0, 0)),
                  pl.BlockSpec((1, D), lambda i: (0, 0)),
                  pl.BlockSpec((1, D), lambda i: (0, 0)),
                  pl.BlockSpec((D, ncls_pad), lambda i: (0, 0)),
                  pl.BlockSpec((1, ncls_pad), lambda i: (0, 0))],
        out_specs=pl.BlockSpec((B, ncls_pad), lambda i: (0, 0)),
        out_shape=jax.ShapeDtypeStruct((B, ncls_pad), jnp.float32),
    )(cls_tok, params['norm_g'], params['norm_b'], params['fc_w'], params['fc_b'])
    logits = logits[:, :params['num_classes']]
    if return_cls:
        return logits, cls_tok
    return logits


# ------------------------------ parameter setup --------------------------------

def init_params(key, *, in_channels, patch, image_size, dim, ff_dim,
                num_heads, num_layers, num_classes):
    gh = image_size // patch
    seq_len = gh * gh + 1
    k_in = in_channels * patch * patch
    k_pad = _round_up(k_in, 128)               # lane-aligned patch contraction dim
    ncls_pad = _round_up(num_classes, 128)     # lane-dense classifier output
    q_scale = 1.0 / math.sqrt(dim // num_heads)

    keys = iter(jax.random.split(key, 32))
    bf = jnp.bfloat16

    def rnd(shape, scale=0.02):
        return scale * jax.random.normal(next(keys), shape, jnp.float32)

    patch_w = jnp.pad(rnd((k_in, dim)), ((0, k_pad - k_in), (0, 0))).astype(bf)

    params = dict(
        patch=patch, dim=dim, ff_dim=ff_dim, num_heads=num_heads,
        num_classes=num_classes, num_classes_pad=ncls_pad,
        patch_in=k_in, patch_in_pad=k_pad,
        patch_w=patch_w,                               # bf16 MXU weight (padded K)
        patch_b=rnd((1, dim), 1e-6),
        class_token=jnp.zeros((1, 1, dim), jnp.float32),
        pos_emb=rnd((1, seq_len, dim)),
        norm_g=jnp.ones((1, dim), jnp.float32),
        norm_b=jnp.zeros((1, dim), jnp.float32),
        # Reference init_weights() zero-inits the classifier head.  Stored
        # lane-padded so the head kernel's store is dense; sliced in wrapper.
        fc_w=jnp.zeros((dim, ncls_pad), bf),
        fc_b=jnp.zeros((1, ncls_pad), jnp.float32),
    )

    L = num_layers
    # Per-layer params stacked along a leading L axis so the transformer kernel
    # can index them with the layer grid coordinate.  Attention scale
    # 1/sqrt(head_dim) is folded into wq/bq here (host-side, free); a model
    # loading PyTorch weights must apply the same fold.
    params['blocks'] = dict(
        ln1_g=jnp.ones((L, 1, dim), jnp.float32),
        ln1_b=jnp.zeros((L, 1, dim), jnp.float32),
        wq=(rnd((L, dim, dim)) * q_scale).astype(bf),
        bq=rnd((L, 1, dim), 1e-6) * q_scale,
        wk=rnd((L, dim, dim)).astype(bf), bk=rnd((L, 1, dim), 1e-6),
        wv=rnd((L, dim, dim)).astype(bf), bv=rnd((L, 1, dim), 1e-6),
        wo=rnd((L, dim, dim)).astype(bf), bo=rnd((L, 1, dim), 1e-6),
        ln2_g=jnp.ones((L, 1, dim), jnp.float32),
        ln2_b=jnp.zeros((L, 1, dim), jnp.float32),
        w1=rnd((L, dim, ff_dim)).astype(bf), b1=rnd((L, 1, ff_dim), 1e-6),
        w2=rnd((L, ff_dim, dim)).astype(bf), b2=rnd((L, 1, dim), 1e-6),
    )
    return params


# ----------------------------------- main ---------------------------------------

if __name__ == "__main__":
    key = jax.random.PRNGKey(0)
    kp, kx = jax.random.split(key)

    # Small but lane-aligned config: 16x16 image, 4x4 patches -> 16 patches
    # (+1 class token = 17 tokens), dim=128, 4 heads (head_dim=32), ff=256,
    # 2 layers, 10 classes.
    B, C, H, W = 2, 3, 16, 16
    PATCH, DIM, FF, HEADS, LAYERS, NCLS = 4, 128, 256, 4, 2, 10

    params = init_params(kp, in_channels=C, patch=PATCH, image_size=H, dim=DIM,
                         ff_dim=FF, num_heads=HEADS, num_layers=LAYERS,
                         num_classes=NCLS)
    x = jax.random.normal(kx, (B, C, H, W), jnp.float32)

    # fc is zero-initialized (as in the reference), so also check the class-token
    # features to validate the transformer trunk end-to-end.
    logits, cls_feat = vit_forward(x, params, return_cls=True)
    logits = jax.block_until_ready(logits)
    assert logits.shape == (B, NCLS), logits.shape
    assert bool(jnp.all(jnp.isfinite(logits)))
    assert bool(jnp.all(jnp.isfinite(cls_feat)))
    print("KERNEL_OK")
</pallas_src>

<mosaic_0001>
module attributes {stable_mosaic.version = 11 : i64} {
  func.func @linear_kernel(%arg0: i32, %arg1: memref<32x128xbf16, #tpu.memory_space<vmem>>, %arg2: memref<128x128xbf16, #tpu.memory_space<vmem>>, %arg3: memref<1x128xf32, #tpu.memory_space<vmem>>, %arg4: memref<32x128xf32, #tpu.memory_space<vmem>>) attributes {dimension_semantics = [#tpu.dimension_semantics<parallel>], iteration_bounds = array<i64: 1>, scalar_prefetch = 0 : i64, scratch_operands = 0 : i64, tpu.core_type = #tpu.core_type<tc>, window_params = [{transform_indices = @transform_0, window_bounds = array<i64: 32, 128>}, {pipeline_mode = #tpu.pipeline_mode<synchronous>, transform_indices = @transform_1, window_bounds = array<i64: 128, 128>}, {pipeline_mode = #tpu.pipeline_mode<synchronous>, transform_indices = @transform_2, window_bounds = array<i64: 1, 128>}, {transform_indices = @transform_3, window_bounds = array<i64: 32, 128>}]} {
    %c0 = arith.constant 0 : index
    %c0_0 = arith.constant 0 : index
    %0 = vector.load %arg1[%c0, %c0_0] : memref<32x128xbf16, #tpu.memory_space<vmem>>, vector<32x128xbf16>
    %c0_1 = arith.constant 0 : index
    %c0_2 = arith.constant 0 : index
    %1 = vector.load %arg2[%c0_1, %c0_2] : memref<128x128xbf16, #tpu.memory_space<vmem>>, vector<128x128xbf16>
    %cst = arith.constant dense<0.000000e+00> : vector<32x128xf32>
    %2 = tpu.matmul %0, %1, %cst {dimension_numbers = #tpu.dot_dimension_numbers<[1], [0], [0], [1], [0, 0, 1, 1], [], []>} : vector<32x128xbf16>, vector<128x128xbf16>, vector<32x128xf32> -> vector<32x128xf32>
    %c0_3 = arith.constant 0 : index
    %c0_4 = arith.constant 0 : index
    %3 = vector.load %arg3[%c0_3, %c0_4] : memref<1x128xf32, #tpu.memory_space<vmem>>, vector<1x128xf32>
    %4 = vector.broadcast %3 : vector<1x128xf32> to vector<32x128xf32>
    %5 = arith.addf %2, %4 : vector<32x128xf32>
    %c0_5 = arith.constant 0 : index
    %c0_6 = arith.constant 0 : index
    %6 = vector.load %arg4[%c0_5, %c0_6] : memref<32x128xf32, #tpu.memory_space<vmem>>, vector<32x128xf32>
    tpu.vector_store %arg4[%c0_5, %c0_6], %5 {strides = array<i32>} : memref<32x128xf32, #tpu.memory_space<vmem>>, vector<32x128xf32>,
    return
  }
  func.func @transform_0(%arg0: i32) -> (i32, i32) {
    %c0_i32 = arith.constant 0 : i32
    %c0_i32_0 = arith.constant 0 : i32
    return %arg0, %c0_i32 : i32, i32
  }
  func.func @transform_1(%arg0: i32) -> (i32, i32) {
    %c0_i32 = arith.constant 0 : i32
    %c0_i32_0 = arith.constant 0 : i32
    %c0_i32_1 = arith.constant 0 : i32
    return %c0_i32, %c0_i32_0 : i32, i32
  }
  func.func @transform_2(%arg0: i32) -> (i32, i32) {
    %c0_i32 = arith.constant 0 : i32
    %c0_i32_0 = arith.constant 0 : i32
    %c0_i32_1 = arith.constant 0 : i32
    return %c0_i32, %c0_i32_0 : i32, i32
  }
  func.func @transform_3(%arg0: i32) -> (i32, i32) {
    %c0_i32 = arith.constant 0 : i32
    %c0_i32_0 = arith.constant 0 : i32
    return %arg0, %c0_i32 : i32, i32
  }
}

</mosaic_0001>

<llo_original>
// kernel: tpu_custom_call.1
$region0: #{tpu_custom_call.1}
  #allocation0 [shape = 'u32[]', space=smem, size = 0x4, offset = 0x4, fixed_abs, tag = 'smem constant byte address 0x4 - core index']
  #allocation1 [shape = 'u32[72,128]{1,0:T(1,128)}', space=vmem, size = 0x9000, scoped, tag = 'internal scratch']
  %s0 = inlined_call_operand.hbm [shape: bf16[32,128], index: 0, kind: input, shape index: {}]
  %s1 = inlined_call_operand.hbm [shape: bf16[128,128], index: 1, kind: input, shape index: {}]
  %s2 = inlined_call_operand.vmem [shape: f32[1,128], index: 2, kind: input, shape index: {}]
  %s3 = inlined_call_operand.hbm [shape: f32[32,128], index: 3, kind: output, shape index: {}]
  %s4 = sld [smem:[#allocation0]]
  $region30: #{tpu_custom_call.1} parent=0
    _
  %s6 = ssub.s32 1, %s4
  %s7 = scalar_select 0, %s6, %s4
  $region1: #{tpu_custom_call.1} parent=0
    #allocation2 [shape = 'u8[8192]{0}', space=vmem, size = 0x2000, scoped, tag = 'input window, operand 0, single buffered']
    #allocation3 [shape = 's32[1]{0}', space=sflag, size = 0x4, scoped, tag = 'scoped memory for tpu_custom_call.1']
    #allocation4 [shape = 's32[1]{0}', space=sflag, size = 0x4, scoped, tag = 'scoped memory for tpu_custom_call.1']
    #allocation5 [shape = 'u8[32768]{0}', space=vmem, size = 0x8000, scoped, tag = 'input window, operand 1, single buffered']
    #allocation6 [shape = 's32[1]{0}', space=sflag, size = 0x4, scoped, tag = 'scoped memory for tpu_custom_call.1']
    #allocation7 [shape = 'u8[16384]{0}', space=vmem, size = 0x4000, scoped, tag = 'output window, operand 0, single buffered']
    %8 = vsyncpa [#allocation3], 0
    %9 = vsyncpa [#allocation6], 0
    %10 = vsyncpa [#allocation4], 0
    // Predicated region
    $region2: #{tpu_custom_call.1} parent=1 // pred_check
      _
    $region3: #{tpu_custom_call.1} parent=1 // pred_check_branch
      %12 = sbr.rel (0) target = $region5
    $region4: #{tpu_custom_call.1} parent=1 // pred_region
      %14 = vsyncadd [#allocation3], 0
      %s15 = sshll.u32 %s0, 4
      %s16 = int_to_ptr.hbm [resolvable:$true] %s15
      %s17 = sshll.u32 [#allocation2], 4
      %s18 = int_to_ptr.vmem [resolvable:$true] %s17
      %23 = dma.hbm_to_vmem [thread:$0]  %s16, 256, %s18, [#allocation3], 64, 64, 4
    $region5: #{tpu_custom_call.1} parent=1 // pred_fallthru
      _
    // Predicated region
    $region6: #{tpu_custom_call.1} parent=1 // pred_check
      _
    $region7: #{tpu_custom_call.1} parent=1 // pred_check_branch
      %25 = sbr.rel (0) target = $region9
    $region8: #{tpu_custom_call.1} parent=1 // pred_region
      %27 = vsyncadd [#allocation6], 0
      %s28 = sshll.u32 %s1, 4
      %s29 = int_to_ptr.hbm [resolvable:$true] %s28
      %s30 = sshll.u32 [#allocation5], 4
      %s31 = int_to_ptr.vmem [resolvable:$true] %s30
      %36 = dma.hbm_to_vmem [thread:$0]  %s29, 1024, %s31, [#allocation6], 64, 64, 4
    $region9: #{tpu_custom_call.1} parent=1 // pred_fallthru
      _
    // Predicated region
    $region10: #{tpu_custom_call.1} parent=1 // pred_check
      _
    $region11: #{tpu_custom_call.1} parent=1 // pred_check_branch
      %38 = sbr.rel (0) target = $region13
    $region12: #{tpu_custom_call.1} parent=1 // pred_region
      _
    $region13: #{tpu_custom_call.1} parent=1 // pred_fallthru
      _
    // Predicated region
    $region14: #{tpu_custom_call.1} parent=1 // pred_check
      _
    $region15: #{tpu_custom_call.1} parent=1 // pred_check_branch
      %40 = sbr.rel (0) target = $region17
    $region16: #{tpu_custom_call.1} parent=1 // pred_region
      %42 = dma.done [#allocation3], 256
    $region17: #{tpu_custom_call.1} parent=1 // pred_fallthru
      _
    // Predicated region
    $region18: #{tpu_custom_call.1} parent=1 // pred_check
      _
    $region19: #{tpu_custom_call.1} parent=1 // pred_check_branch
      %44 = sbr.rel (0) target = $region21
    $region20: #{tpu_custom_call.1} parent=1 // pred_region
      %46 = dma.done [#allocation6], 1024
    $region21: #{tpu_custom_call.1} parent=1 // pred_fallthru
      _
    %v47 = vld [vmem:[#allocation2] sm:$0xf]
    %v48 = vld [vmem:[#allocation2 + $0x4] sm:$0xf]
    %v49 = vld [vmem:[#allocation2 + $0x8] sm:$0xf]
    %v50 = vld [vmem:[#allocation2 + $0xc] sm:$0xf]
    %v51 = vld [vmem:[#allocation5] sm:$0xf]
    %v52 = vld [vmem:[#allocation5 + $0x4] sm:$0xf]
    %v53 = vld [vmem:[#allocation5 + $0x8] sm:$0xf]
    %v54 = vld [vmem:[#allocation5 + $0xc] sm:$0xf]
    %v55 = vld [vmem:[#allocation5 + $0x10] sm:$0xf]
    %v56 = vld [vmem:[#allocation5 + $0x14] sm:$0xf]
    %v57 = vld [vmem:[#allocation5 + $0x18] sm:$0xf]
    %v58 = vld [vmem:[#allocation5 + $0x1c] sm:$0xf]
    %v59 = vld [vmem:[#allocation5 + $0x20] sm:$0xf]
    %v60 = vld [vmem:[#allocation5 + $0x24] sm:$0xf]
    %v61 = vld [vmem:[#allocation5 + $0x28] sm:$0xf]
    %v62 = vld [vmem:[#allocation5 + $0x2c] sm:$0xf]
    %v63 = vld [vmem:[#allocation5 + $0x30] sm:$0xf]
    %v64 = vld [vmem:[#allocation5 + $0x34] sm:$0xf]
    %v65 = vld [vmem:[#allocation5 + $0x38] sm:$0xf]
    %v66 = vld [vmem:[#allocation5 + $0x3c] sm:$0xf]
    %v67 = vld [vmem:[%s2] sm:$0x1]
    %v69 = vperm.slane %v67, 0
    %v75 = vunpack.c.l.b16 %v47
    %v76 = vunpack.c.l.b16 %v48
    %v77 = vunpack.c.l.b16 %v49
    %v78 = vunpack.c.l.b16 %v50
    %v79 = vpack.c.b16 %v76, %v75
    %v80 = vpack.c.b16 %v78, %v77
    %v99 = vunpack.c.l.b16 %v51
    %v100 = vunpack.c.l.b16 %v52
    %v101 = vunpack.c.l.b16 %v53
    %v102 = vunpack.c.l.b16 %v54
    %v103 = vunpack.c.l.b16 %v55
    %v104 = vunpack.c.l.b16 %v56
    %v105 = vunpack.c.l.b16 %v57
    %v106 = vunpack.c.l.b16 %v58
    %v107 = vunpack.c.l.b16 %v59
    %v108 = vunpack.c.l.b16 %v60
    %v109 = vunpack.c.l.b16 %v61
    %v110 = vunpack.c.l.b16 %v62
    %v111 = vunpack.c.l.b16 %v63
    %v112 = vunpack.c.l.b16 %v64
    %v113 = vunpack.c.l.b16 %v65
    %v114 = vunpack.c.l.b16 %v66
    %v115 = vpack.c.b16 %v100, %v99
    %v116 = vpack.c.b16 %v102, %v101
    %v117 = vpack.c.b16 %v104, %v103
    %v118 = vpack.c.b16 %v106, %v105
    %v119 = vpack.c.b16 %v108, %v107
    %v120 = vpack.c.b16 %v110, %v109
    %v121 = vpack.c.b16 %v112, %v111
    %v122 = vpack.c.b16 %v114, %v113
    %131 = vmatpush.bf16.msra.mxu0 %v122
    %132 = vmatpush.bf16.msra.mxu0 %v121
    %133 = vmatpush.bf16.msra.mxu0 %v120
    %134 = vmatpush.bf16.msra.mxu0 %v119
    %135 = vmatpush.bf16.msra.mxu0 %v118
    %136 = vmatpush.bf16.msra.mxu0 %v117
    %137 = vmatpush.bf16.msra.mxu0 %v116
    %138 = vmatpush.bf16.msra.mxu0 %v115
    %139 = vmatmul.bf16.gmra.mxu0 %v79
    %v140 = vpop.f32.mrf.mxu0
    %v141 = vadd.f32 %v69, %v140
    %v142 = vpop.f32.mrf.mxu0
    %v143 = vadd.f32 %v69, %v142
    %144 = vmatmul.bf16.gmra.mxu0 %v80
    %v145 = vpop.f32.mrf.mxu0
    %v146 = vadd.f32 %v69, %v145
    %v147 = vpop.f32.mrf.mxu0
    %v148 = vadd.f32 %v69, %v147
    %149 = vdwg.mxu0
    %150 = vst [vmem:[#allocation7] sm:$0xff] %v141
    %151 = vst [vmem:[#allocation7 + $0x8] sm:$0xff] %v143
    %152 = vst [vmem:[#allocation7 + $0x10] sm:$0xff] %v146
    %153 = vst [vmem:[#allocation7 + $0x18] sm:$0xff] %v148
    // Predicated region
    $region22: #{tpu_custom_call.1} parent=1 // pred_check
      _
    $region23: #{tpu_custom_call.1} parent=1 // pred_check_branch
      %155 = sbr.rel (0) target = $region25
    $region24: #{tpu_custom_call.1} parent=1 // pred_region
      %157 = vsyncadd [#allocation4], 0
      %s158 = sshll.u32 [#allocation7], 4
      %s159 = int_to_ptr.vmem [resolvable:$true] %s158
      %s160 = sshll.u32 %s3, 4
      %s161 = int_to_ptr.hbm [resolvable:$true] %s160
      %166 = dma.vmem_to_hbm [thread:$0]  %s159, 512, %s161, [#allocation4], 128, 128, 8
    $region25: #{tpu_custom_call.1} parent=1 // pred_fallthru
      _
    // Predicated region
    $region26: #{tpu_custom_call.1} parent=1 // pred_check
      _
    $region27: #{tpu_custom_call.1} parent=1 // pred_check_branch
      %168 = sbr.rel (0) target = $region29
    $region28: #{tpu_custom_call.1} parent=1 // pred_region
      %170 = dma.done [#allocation4], 512
    $region29: #{tpu_custom_call.1} parent=1 // pred_fallthru
      _
    %171 = vsyncpa [#allocation3], 1
    %172 = vsyncpa [#allocation6], 1
    %173 = vsyncpa [#allocation4], 1

</llo_original>
